<compile_context>
chip_gen: v7x
topology: tpu7x:2x2x1
jax: 0.10.0
libtpu: 0.0.40
codegen_flags: <defaults>
</compile_context>

<pallas_src>
import functools
import math

import jax
import jax.numpy as jnp
from jax.experimental import pallas as pl
from jax.experimental.pallas import tpu as pltpu

_MAX_BLOCK_ROWS = 2048            # bf16: 2048 x 512 x 2 B = 2 MiB / stream / buffer
_VMEM_LIMIT = 32 * 1024 * 1024    # safe on v5e/v6e (128 MiB) and v7x (64 MiB)


def _cdiv(a, b):
    return -(-a // b)


def _round_up(a, m):
    return _cdiv(a, m) * m


@functools.lru_cache(maxsize=None)
def _num_tensorcores():
    """Best-effort TensorCores-per-chip (2 on v7x, else 1)."""
    try:
        info = pltpu.get_tpu_info()
        for name in ("num_cores", "core_count", "num_tensorcores",
                     "tensorcores_per_chip", "cores_per_chip"):
            v = getattr(info, name, None)
            if isinstance(v, int) and v in (1, 2):
                return v
    except Exception:
        pass
    try:
        if "v7" in jax.devices()[0].device_kind.lower():
            return 2
    except Exception:
        pass
    return 1


# --------------------------------------------------------------------------
# In-kernel fused weighted focal BCE on logits (softplus/log rewrite).
# --------------------------------------------------------------------------
def _focal_bce_weighted(x, t, w, *, gamma, log_eps):
    neg_abs = -jnp.abs(x)
    sp = jnp.log(1.0 + jnp.exp(neg_abs))          # softplus(-|x|)
    log_p = jnp.minimum(x, 0.0) - sp              # log sigmoid(x)        (exact)
    log_1mp = jnp.minimum(-x, 0.0) - sp           # log(1 - sigmoid(x))   (exact)
    # log(p + eps) tail emulated by clamping at log(eps).  Kept (2 VALU
    # ops/elem, below the bf16 HBM roofline) for fidelity to the reference at
    # extreme logits (|x| > ~18); drop if the bundle shows VALU binding.
    lp = jnp.maximum(log_p, log_eps)
    l1p = jnp.maximum(log_1mp, log_eps)
    if gamma == 1:
        pow_pos = jnp.exp(log_1mp)                # == (1 - p), no reciprocal/select
        pow_neg = jnp.exp(log_p)                  # == p
    else:
        pow_pos = jnp.exp(gamma * log_1mp)        # (1 - p) ** gamma
        pow_neg = jnp.exp(gamma * log_p)          # p ** gamma
    return -w * (pow_pos * (t * lp) + pow_neg * ((1.0 - t) * l1p))


# --------------------------------------------------------------------------
# Reduction kernel: small (8, lane) accumulator, one reduce+store per chunk.
# --------------------------------------------------------------------------
def _sum_kernel(x_ref, t_ref, w_ref, out_ref, acc_ref, *, gamma, log_eps,
                block_rows, lane, rows, steps, need_mask, fold8, acc_rows):
    c = pl.program_id(0)
    s = pl.program_id(1)

    @pl.when(s == 0)
    def _():
        acc_ref[c] = jnp.zeros((acc_rows, lane), jnp.float32)

    x = x_ref[...].astype(jnp.float32)
    t = t_ref[...].astype(jnp.float32)
    w = w_ref[...].astype(jnp.float32)
    contrib = _focal_bce_weighted(x, t, w, gamma=gamma, log_eps=log_eps)

    if need_mask:
        # zero rows past the end of the (un-padded) flat input; also zeroes
        # the duplicate blocks produced by the clamped index_map.
        row0 = (c * steps + s) * block_rows
        rid = row0 + jax.lax.broadcasted_iota(jnp.int32, (block_rows, lane), 0)
        contrib = jnp.where(rid < rows, contrib, 0.0)

    if fold8:
        # sublane-splitting reshape (view) + leading-axis sum: pure VALU adds.
        contrib = contrib.reshape(block_rows // 8, 8, lane).sum(axis=0)
    acc_ref[c] += contrib

    @pl.when(s == steps - 1)
    def _():
        out_ref[...] = jnp.broadcast_to(jnp.sum(acc_ref[c]), (1, 8, 128))


# --------------------------------------------------------------------------
# Elementwise kernel for reduction='none' (bf16 output stream).
# --------------------------------------------------------------------------
def _map_kernel(x_ref, t_ref, w_ref, o_ref, *, gamma, log_eps):
    x = x_ref[...].astype(jnp.float32)
    t = t_ref[...].astype(jnp.float32)
    w = w_ref[...].astype(jnp.float32)
    o_ref[...] = _focal_bce_weighted(
        x, t, w, gamma=gamma, log_eps=log_eps).astype(o_ref.dtype)


def _lane_width(total):
    for lane in (512, 256, 128):
        if total % lane == 0:
            return lane
    return None


def _weighted_focal_loss_pallas(x, target, weight_maps, *, gamma, eps, reduction):
    shape = x.shape
    total = int(x.size)
    log_eps = float(math.log(eps))

    lane = _lane_width(total)
    if lane is not None:
        rows = total // lane
        padded = False

        def prep(a):  # free reshape + one (fusable) bf16 cast, no jnp.pad copy
            return a.astype(jnp.bfloat16).reshape(rows, lane)
    else:
        # TODO(synk): numel not a multiple of 128 -- fall back to zero-padding
        # (one extra HBM pass per stream); rare for segmentation shapes.
        lane = 128
        rows = _cdiv(total, lane)
        pad = rows * lane - total
        padded = True

        def prep(a):
            flat = a.reshape(-1).astype(jnp.bfloat16)
            return jnp.pad(flat, (0, pad)).reshape(rows, lane)

    xf, tf, wf = prep(x), prep(target), prep(weight_maps)

    if reduction == "none":
        block_rows = rows if rows <= _MAX_BLOCK_ROWS else _MAX_BLOCK_ROWS
        n_blocks = _cdiv(rows, block_rows)
        spec = pl.BlockSpec((block_rows, lane), lambda i: (i, 0))
        out = pl.pallas_call(
            functools.partial(_map_kernel, gamma=gamma, log_eps=log_eps),
            out_shape=jax.ShapeDtypeStruct((rows, lane), jnp.bfloat16),
            grid_spec=pltpu.PrefetchScalarGridSpec(
                num_scalar_prefetch=0, grid=(n_blocks,),
                in_specs=[spec, spec, spec], out_specs=spec),
            compiler_params=pltpu.CompilerParams(
                dimension_semantics=("parallel",),
                vmem_limit_bytes=_VMEM_LIMIT),
            cost_estimate=pl.CostEstimate(
                flops=25 * total, transcendentals=4 * total,
                bytes_accessed=8 * total),
        )(xf, tf, wf)
        out = out.reshape(-1)
        if padded:
            out = out[:total]
        # NOTE: returned as bf16 (reference returns f32); cast downstream if
        # full per-pixel precision is needed.
        return out.reshape(shape)

    if reduction == "mean":
        scale = 1.0 / float(total)
    elif reduction == "sum":
        scale = 1.0
    else:
        raise ValueError(f"unknown reduction {reduction!r}")

    def run_sum(num_chunks, chunk_sem):
        rows_per_chunk = _cdiv(rows, num_chunks)
        block_rows = min(_MAX_BLOCK_ROWS, _round_up(rows_per_chunk, 8))
        if block_rows >= rows:          # everything fits in one block
            block_rows = rows
            num_chunks = 1
            chunk_sem = "arbitrary"
        n_blocks = _cdiv(rows, block_rows)
        steps = _cdiv(n_blocks, num_chunks)
        need_mask = (num_chunks * steps * block_rows != rows)
        fold8 = (block_rows % 8 == 0) and (block_rows > 8)
        acc_rows = 8 if fold8 else block_rows

        def in_idx(c, s):
            # clamp so no grid point DMAs a fully out-of-bounds block; the
            # in-kernel row mask zeroes the duplicated contribution.
            return (jnp.minimum(c * steps + s, n_blocks - 1), 0)

        in_spec = pl.BlockSpec((block_rows, lane), in_idx)
        kernel = functools.partial(
            _sum_kernel, gamma=gamma, log_eps=log_eps, block_rows=block_rows,
            lane=lane, rows=rows, steps=steps, need_mask=need_mask,
            fold8=fold8, acc_rows=acc_rows)
        return pl.pallas_call(
            kernel,
            out_shape=jax.ShapeDtypeStruct((num_chunks, 8, 128), jnp.float32),
            grid_spec=pltpu.PrefetchScalarGridSpec(
                num_scalar_prefetch=0,
                grid=(num_chunks, steps),
                in_specs=[in_spec, in_spec, in_spec],
                out_specs=pl.BlockSpec((1, 8, 128), lambda c, s: (c, 0, 0)),
                scratch_shapes=[pltpu.VMEM((num_chunks, acc_rows, lane),
                                           jnp.float32)]),
            compiler_params=pltpu.CompilerParams(
                dimension_semantics=(chunk_sem, "arbitrary"),
                vmem_limit_bytes=_VMEM_LIMIT),
            cost_estimate=pl.CostEstimate(
                flops=25 * total, transcendentals=4 * total,
                bytes_accessed=6 * total),
        )(xf, tf, wf)

    n_cores = _num_tensorcores()
    if n_cores > 1 and rows >= 8 * n_cores:
        try:
            partials = run_sum(n_cores, getattr(pltpu, "CORE_PARALLEL"))
        except Exception:
            # TODO(synk): CORE_PARALLEL not supported here -> single-core grid.
            partials = run_sum(1, "arbitrary")
    else:
        partials = run_sum(1, "arbitrary")

    return jnp.sum(partials[:, 0, 0]) * scale


# --------------------------------------------------------------------------
# Weight map construction (plain-JAX glue): exact separable Euclidean distance
# transform instead of the O((H*W)^2) pairwise matrix.
# --------------------------------------------------------------------------
_BIG = 1.0e6
_BIG2 = _BIG * _BIG


def _boundary_mask(mask_bool):
    """Foreground pixel with at least one 4-neighbour background (zero pad)."""
    m = mask_bool.astype(jnp.float32)
    p = jnp.pad(m, 1)
    up, down = p[:-2, 1:-1], p[2:, 1:-1]
    left, right = p[1:-1, :-2], p[1:-1, 2:]
    neigh_min = jnp.minimum(jnp.minimum(up, down), jnp.minimum(left, right))
    return (m > 0.5) & (neigh_min < 0.5)


def _edt_sq(mask_bool):
    """Exact squared Euclidean distance to the nearest True pixel.

    Pass 1: 1-D chamfer along axis 0 gives per-column vertical distance.
    Pass 2: exact min over source columns of (x-x')^2 + dcol(y,x')^2, scanned
    in column chunks so memory stays O(H*W).  Empty set -> ~_BIG2, so
    exp(-sqrt(d)/sigma) underflows to 0 (no contribution), matching the
    previous behavior.
    """
    H, W = mask_bool.shape
    f = jnp.where(mask_bool, 0.0, _BIG).astype(jnp.float32)

    def chamfer(carry, row):
        d = jnp.minimum(row, carry + 1.0)
        return d, d

    init = jnp.full((W,), _BIG, jnp.float32)
    _, dfwd = jax.lax.scan(chamfer, init, f)
    _, dbwd = jax.lax.scan(chamfer, init, f[::-1])
    dcol = jnp.minimum(dfwd, dbwd[::-1])
    dcol2 = jnp.minimum(dcol * dcol, _BIG2)                     # (H, W)

    ch = 32                                                     # source-column chunk
    Wp = _round_up(W, ch)
    dcol2_p = jnp.pad(dcol2, ((0, 0), (0, Wp - W)), constant_values=_BIG2)
    xs = jnp.arange(W, dtype=jnp.float32)
    xs_p = jnp.pad(xs, (0, Wp - W))

    def col_chunk(best, c):
        j0 = c * ch
        d_c = jax.lax.dynamic_slice_in_dim(dcol2_p, j0, ch, axis=1)   # (H, ch)
        x_c = jax.lax.dynamic_slice_in_dim(xs_p, j0, ch, axis=0)      # (ch,)
        dx2 = (xs[None, :, None] - x_c[None, None, :]) ** 2           # (1, W, ch)
        cand = jnp.min(d_c[:, None, :] + dx2, axis=-1)                # (H, W)
        return jnp.minimum(best, cand), None

    best0 = jnp.full((H, W), _BIG2, jnp.float32)
    best, _ = jax.lax.scan(col_chunk, best0, jnp.arange(Wp // ch))
    return best


def _weight_map_single(probs2d, label2d, theta, sigma):
    # TODO(synk): `get_boundaries` / `C.one_value_euclidean` are an external
    # host-side C library in the reference; reconstructed as 0.5-threshold
    # 4-connectivity boundary masks + exact nearest-boundary Euclidean
    # distances via the separable EDT above.
    pred_b = _boundary_mask(probs2d > 0.5)
    lab_b = _boundary_mask(label2d > 0.5)
    dist_to_pred = jnp.sqrt(_edt_sq(pred_b))
    dist_to_lab = jnp.sqrt(_edt_sq(lab_b))
    w = jnp.ones(probs2d.shape, jnp.float32)
    w = w + jnp.where(lab_b, theta * jnp.exp(-dist_to_pred / sigma), 0.0)
    w = w + jnp.where(pred_b, theta * jnp.exp(-dist_to_lab / sigma), 0.0)
    return w


# --------------------------------------------------------------------------
# Public API mirroring HausdorfLoss.forward
# --------------------------------------------------------------------------
def hausdorf_loss(input_logits, target, *, reduction="mean",
                  gamma=1, theta=1.0, sigma=1.0, eps=1e-8):
    input_logits = input_logits.astype(jnp.float32)
    target = target.astype(jnp.float32)

    probs = jax.nn.sigmoid(input_logits)              # boundary extraction only
    weight_maps = jax.vmap(
        lambda p, t: _weight_map_single(p, t, theta, sigma))(probs, target)
    weight_maps = jax.lax.stop_gradient(weight_maps)  # reference detaches to CPU

    return _weighted_focal_loss_pallas(
        input_logits, target, weight_maps,
        gamma=gamma, eps=eps, reduction=reduction)


if __name__ == "__main__":
    key = jax.random.PRNGKey(0)
    k1, k2, k3, k4, k5, k6 = jax.random.split(key, 6)
    eps = 1e-8

    def f32_reference(x, tgt):
        probs = jax.nn.sigmoid(x)
        wm = jax.vmap(lambda p, t: _weight_map_single(p, t, 1.0, 1.0))(probs, tgt)
        return jnp.mean(wm * (-(1.0 - probs) * tgt * jnp.log(probs + eps)
                              - probs * (1.0 - tgt) * jnp.log(1.0 - probs + eps)))

    # 1) primary test: (2, 16, 16), mean / sum / none
    B, H, W = 2, 16, 16
    x = jax.random.normal(k1, (B, H, W), dtype=jnp.float32)
    tgt = (jax.random.uniform(k2, (B, H, W)) > 0.5).astype(jnp.float32)

    loss = hausdorf_loss(x, tgt)                      # reduction='mean'
    jax.block_until_ready(loss)
    assert loss.shape == () and bool(jnp.isfinite(loss))
    ref = f32_reference(x, tgt)
    # bf16 streaming of logits / weight maps adds ~0.2-0.5% rounding
    assert bool(jnp.allclose(loss, ref, rtol=2e-2, atol=1e-3)), (loss, ref)

    loss_sum = hausdorf_loss(x, tgt, reduction="sum")
    loss_map = hausdorf_loss(x, tgt, reduction="none")
    jax.block_until_ready((loss_sum, loss_map))
    assert loss_map.shape == (B, H, W)
    assert bool(jnp.all(jnp.isfinite(loss_map.astype(jnp.float32))))
    assert bool(jnp.allclose(loss_sum, loss * (B * H * W), rtol=2e-2, atol=1e-2))

    # 2) force the multi-block / masked-tail / folded-accumulator path with a
    #    tiny block size (17 rows of 512 lanes, block_rows forced to 16).
    _saved = _MAX_BLOCK_ROWS
    _MAX_BLOCK_ROWS = 16
    x2 = jax.random.normal(k3, (1, 68, 128), dtype=jnp.float32)
    t2 = (jax.random.uniform(k4, (1, 68, 128)) > 0.5).astype(jnp.float32)
    loss2 = hausdorf_loss(x2, t2)
    jax.block_until_ready(loss2)
    ref2 = f32_reference(x2, t2)
    assert bool(jnp.allclose(loss2, ref2, rtol=2e-2, atol=1e-3)), (loss2, ref2)
    _MAX_BLOCK_ROWS = _saved

    # 3) ragged total (not a multiple of 128) -> zero-pad fallback path.
    x3 = jax.random.normal(k5, (1, 10, 10), dtype=jnp.float32)
    t3 = (jax.random.uniform(k6, (1, 10, 10)) > 0.5).astype(jnp.float32)
    loss3 = hausdorf_loss(x3, t3)
    jax.block_until_ready(loss3)
    ref3 = f32_reference(x3, t3)
    assert bool(jnp.allclose(loss3, ref3, rtol=2e-2, atol=1e-3)), (loss3, ref3)

    print("KERNEL_OK")
</pallas_src>

<mosaic_0001>
module attributes {stable_mosaic.version = 11 : i64} {
  func.func @_sum_kernel(%arg0: i32, %arg1: i32, %arg2: memref<1x512xbf16, #tpu.memory_space<vmem>>, %arg3: memref<1x512xbf16, #tpu.memory_space<vmem>>, %arg4: memref<1x512xbf16, #tpu.memory_space<vmem>>, %arg5: memref<1x8x128xf32, #tpu.memory_space<vmem>>, %arg6: memref<1x1x512xf32, #tpu.memory_space<vmem>>) attributes {dimension_semantics = [#tpu.dimension_semantics<arbitrary>, #tpu.dimension_semantics<arbitrary>], iteration_bounds = array<i64: 1, 1>, scalar_prefetch = 0 : i64, scratch_operands = 1 : i64, tpu.core_type = #tpu.core_type<tc>, window_params = [{transform_indices = @transform_0, window_bounds = array<i64: 1, 512>}, {transform_indices = @transform_1, window_bounds = array<i64: 1, 512>}, {transform_indices = @transform_2, window_bounds = array<i64: 1, 512>}, {transform_indices = @transform_3, window_bounds = array<i64: 1, 8, 128>}]} {
    %c0_i32 = arith.constant 0 : i32
    %0 = arith.cmpi eq, %arg1, %c0_i32 : i32
    %1 = arith.extui %0 : i1 to i32
    %c0_i32_0 = arith.constant 0 : i32
    %2 = arith.cmpi ne, %1, %c0_i32_0 : i32
    scf.if %2 {
      %cst_20 = arith.constant 0.000000e+00 : f32
      %51 = vector.broadcast %cst_20 : f32 to vector<1x512xf32>
      %52 = arith.index_cast %arg0 : i32 to index
      %c0_21 = arith.constant 0 : index
      %c0_22 = arith.constant 0 : index
      %53 = vector.load %arg6[%52, %c0_21, %c0_22] : memref<1x1x512xf32, #tpu.memory_space<vmem>>, vector<1x1x512xf32>
      %54 = vector.shape_cast %53 : vector<1x1x512xf32> to vector<1x512xf32>
      %55 = vector.shape_cast %51 : vector<1x512xf32> to vector<1x1x512xf32>
      tpu.vector_store %arg6[%52, %c0_21, %c0_22], %55 {strides = array<i32>} : memref<1x1x512xf32, #tpu.memory_space<vmem>>, vector<1x1x512xf32>,
    } else {
    }
    %c0 = arith.constant 0 : index
    %c0_1 = arith.constant 0 : index
    %3 = vector.load %arg2[%c0, %c0_1] : memref<1x512xbf16, #tpu.memory_space<vmem>>, vector<1x512xbf16>
    %4 = arith.extf %3 : vector<1x512xbf16> to vector<1x512xf32>
    %c0_2 = arith.constant 0 : index
    %c0_3 = arith.constant 0 : index
    %5 = vector.load %arg3[%c0_2, %c0_3] : memref<1x512xbf16, #tpu.memory_space<vmem>>, vector<1x512xbf16>
    %6 = arith.extf %5 : vector<1x512xbf16> to vector<1x512xf32>
    %c0_4 = arith.constant 0 : index
    %c0_5 = arith.constant 0 : index
    %7 = vector.load %arg4[%c0_4, %c0_5] : memref<1x512xbf16, #tpu.memory_space<vmem>>, vector<1x512xbf16>
    %8 = arith.extf %7 : vector<1x512xbf16> to vector<1x512xf32>
    %9 = math.absf %4 : vector<1x512xf32>
    %cst = arith.constant 0.000000e+00 : f32
    %10 = vector.broadcast %cst : f32 to vector<1x512xf32>
    %11 = arith.subf %10, %9 : vector<1x512xf32>
    %12 = math.exp %11 : vector<1x512xf32>
    %cst_6 = arith.constant 1.000000e+00 : f32
    %13 = vector.broadcast %cst_6 : f32 to vector<1x512xf32>
    %14 = arith.addf %13, %12 : vector<1x512xf32>
    %15 = math.log %14 : vector<1x512xf32>
    %cst_7 = arith.constant 0.000000e+00 : f32
    %16 = vector.broadcast %cst_7 : f32 to vector<1x512xf32>
    %17 = arith.minimumf %4, %16 : vector<1x512xf32>
    %18 = arith.subf %17, %15 : vector<1x512xf32>
    %cst_8 = arith.constant 0.000000e+00 : f32
    %19 = vector.broadcast %cst_8 : f32 to vector<1x512xf32>
    %20 = arith.subf %19, %4 : vector<1x512xf32>
    %cst_9 = arith.constant 0.000000e+00 : f32
    %21 = vector.broadcast %cst_9 : f32 to vector<1x512xf32>
    %22 = arith.minimumf %20, %21 : vector<1x512xf32>
    %23 = arith.subf %22, %15 : vector<1x512xf32>
    %cst_10 = arith.constant -18.420681 : f32
    %24 = vector.broadcast %cst_10 : f32 to vector<1x512xf32>
    %25 = arith.maximumf %18, %24 : vector<1x512xf32>
    %cst_11 = arith.constant -18.420681 : f32
    %26 = vector.broadcast %cst_11 : f32 to vector<1x512xf32>
    %27 = arith.maximumf %23, %26 : vector<1x512xf32>
    %28 = math.exp %23 : vector<1x512xf32>
    %29 = math.exp %18 : vector<1x512xf32>
    %cst_12 = arith.constant 0.000000e+00 : f32
    %30 = vector.broadcast %cst_12 : f32 to vector<1x512xf32>
    %31 = arith.subf %30, %8 : vector<1x512xf32>
    %32 = arith.mulf %6, %25 : vector<1x512xf32>
    %33 = arith.mulf %28, %32 : vector<1x512xf32>
    %cst_13 = arith.constant 1.000000e+00 : f32
    %34 = vector.broadcast %cst_13 : f32 to vector<1x512xf32>
    %35 = arith.subf %34, %6 : vector<1x512xf32>
    %36 = arith.mulf %35, %27 : vector<1x512xf32>
    %37 = arith.mulf %29, %36 : vector<1x512xf32>
    %38 = arith.addf %33, %37 : vector<1x512xf32>
    %39 = arith.mulf %31, %38 : vector<1x512xf32>
    %40 = arith.index_cast %arg0 : i32 to index
    %c0_14 = arith.constant 0 : index
    %c0_15 = arith.constant 0 : index
    %41 = vector.load %arg6[%40, %c0_14, %c0_15] : memref<1x1x512xf32, #tpu.memory_space<vmem>>, vector<1x1x512xf32>
    %42 = vector.shape_cast %41 : vector<1x1x512xf32> to vector<1x512xf32>
    %43 = arith.addf %42, %39 : vector<1x512xf32>
    %44 = arith.index_cast %arg0 : i32 to index
    %c0_16 = arith.constant 0 : index
    %c0_17 = arith.constant 0 : index
    %45 = vector.load %arg6[%44, %c0_16, %c0_17] : memref<1x1x512xf32, #tpu.memory_space<vmem>>, vector<1x1x512xf32>
    %46 = vector.shape_cast %45 : vector<1x1x512xf32> to vector<1x512xf32>
    %47 = vector.shape_cast %43 : vector<1x512xf32> to vector<1x1x512xf32>
    tpu.vector_store %arg6[%44, %c0_16, %c0_17], %47 {strides = array<i32>} : memref<1x1x512xf32, #tpu.memory_space<vmem>>, vector<1x1x512xf32>,
    %c0_i32_18 = arith.constant 0 : i32
    %48 = arith.cmpi eq, %arg1, %c0_i32_18 : i32
    %49 = arith.extui %48 : i1 to i32
    %c0_i32_19 = arith.constant 0 : i32
    %50 = arith.cmpi ne, %49, %c0_i32_19 : i32
    scf.if %50 {
      %51 = arith.index_cast %arg0 : i32 to index
      %c0_20 = arith.constant 0 : index
      %c0_21 = arith.constant 0 : index
      %52 = vector.load %arg6[%51, %c0_20, %c0_21] : memref<1x1x512xf32, #tpu.memory_space<vmem>>, vector<1x1x512xf32>
      %53 = vector.shape_cast %52 : vector<1x1x512xf32> to vector<1x512xf32>
      %54 = vector.shape_cast %53 : vector<1x512xf32> to vector<1x1x512xf32>
      %cst_22 = arith.constant dense<0.000000e+00> : vector<1xf32>
      %55 = vector.multi_reduction <add>, %54, %cst_22 [1, 2] : vector<1x1x512xf32> to vector<1xf32>
      %56 = vector.shape_cast %55 : vector<1xf32> to vector<1x1x1xf32>
      %57 = vector.extract %56[0, 0, 0] : f32 from vector<1x1x1xf32>
      %58 = vector.broadcast %57 : f32 to vector<1x8x128xf32>
      %c0_23 = arith.constant 0 : index
      %c0_24 = arith.constant 0 : index
      %c0_25 = arith.constant 0 : index
      %59 = vector.load %arg5[%c0_23, %c0_24, %c0_25] : memref<1x8x128xf32, #tpu.memory_space<vmem>>, vector<1x8x128xf32>
      tpu.vector_store %arg5[%c0_23, %c0_24, %c0_25], %58 {strides = array<i32>} : memref<1x8x128xf32, #tpu.memory_space<vmem>>, vector<1x8x128xf32>,
    } else {
    }
    return
  }
  func.func @transform_0(%arg0: i32, %arg1: i32) -> (i32, i32) {
    %c1_i32 = arith.constant 1 : i32
    %0 = arith.muli %arg0, %c1_i32 : i32
    %1 = arith.addi %0, %arg1 : i32
    %c0_i32 = arith.constant 0 : i32
    %2 = arith.minsi %1, %c0_i32 : i32
    %c0_i32_0 = arith.constant 0 : i32
    %c0_i32_1 = arith.constant 0 : i32
    return %2, %c0_i32_0 : i32, i32
  }
  func.func @transform_1(%arg0: i32, %arg1: i32) -> (i32, i32) {
    %c1_i32 = arith.constant 1 : i32
    %0 = arith.muli %arg0, %c1_i32 : i32
    %1 = arith.addi %0, %arg1 : i32
    %c0_i32 = arith.constant 0 : i32
    %2 = arith.minsi %1, %c0_i32 : i32
    %c0_i32_0 = arith.constant 0 : i32
    %c0_i32_1 = arith.constant 0 : i32
    return %2, %c0_i32_0 : i32, i32
  }
  func.func @transform_2(%arg0: i32, %arg1: i32) -> (i32, i32) {
    %c1_i32 = arith.constant 1 : i32
    %0 = arith.muli %arg0, %c1_i32 : i32
    %1 = arith.addi %0, %arg1 : i32
    %c0_i32 = arith.constant 0 : i32
    %2 = arith.minsi %1, %c0_i32 : i32
    %c0_i32_0 = arith.constant 0 : i32
    %c0_i32_1 = arith.constant 0 : i32
    return %2, %c0_i32_0 : i32, i32
  }
  func.func @transform_3(%arg0: i32, %arg1: i32) -> (i32, i32, i32) {
    %c0_i32 = arith.constant 0 : i32
    %c0_i32_0 = arith.constant 0 : i32
    %c0_i32_1 = arith.constant 0 : i32
    return %arg0, %c0_i32, %c0_i32_0 : i32, i32, i32
  }
}

</mosaic_0001>

<llo_original>
// kernel: tpu_custom_call.1
$region0: #{tpu_custom_call.1}
  #allocation0 [shape = 'u32[]', space=smem, size = 0x4, offset = 0x4, fixed_abs, tag = 'smem constant byte address 0x4 - core index']
  #allocation1 [shape = 'u32[144,128]{1,0:T(1,128)}', space=vmem, size = 0x12000, scoped, tag = 'internal scratch']
  #allocation2 [shape = 'f32[1,1,512]{2,1,0:T(1,128)}', space=vmem, size = 0x800, scoped, tag = 'scratch operand']
  %s0 = inlined_call_operand.hbm [shape: bf16[1,512], index: 0, kind: input, shape index: {}]
  %s1 = inlined_call_operand.hbm [shape: bf16[1,512], index: 1, kind: input, shape index: {}]
  %s2 = inlined_call_operand.vmem [shape: bf16[1,512], index: 2, kind: input, shape index: {}]
  %s3 = inlined_call_operand.hbm [shape: f32[1,8,128], index: 3, kind: output, shape index: {}]
  %s4 = sld [smem:[#allocation0]]
  $region38: #{tpu_custom_call.1} parent=0
    _
  %s6 = ssub.s32 1, %s4
  %s7 = scalar_select 0, %s6, %s4
  $region1: #{tpu_custom_call.1} parent=0
    #allocation3 [shape = 'u8[2048]{0}', space=vmem, size = 0x800, scoped, tag = 'input window, operand 0, single buffered']
    #allocation4 [shape = 's32[1]{0}', space=sflag, size = 0x4, scoped, tag = 'scoped memory for tpu_custom_call.1']
    #allocation5 [shape = 's32[1]{0}', space=sflag, size = 0x4, scoped, tag = 'scoped memory for tpu_custom_call.1']
    #allocation6 [shape = 'u8[2048]{0}', space=vmem, size = 0x800, scoped, tag = 'input window, operand 1, single buffered']
    #allocation7 [shape = 's32[1]{0}', space=sflag, size = 0x4, scoped, tag = 'scoped memory for tpu_custom_call.1']
    #allocation8 [shape = 'u8[4096]{0}', space=vmem, size = 0x1000, scoped, tag = 'output window, operand 0, single buffered']
    %8 = vsyncpa [#allocation4], 0
    %9 = vsyncpa [#allocation7], 0
    %10 = vsyncpa [#allocation5], 0
    // Predicated region
    $region2: #{tpu_custom_call.1} parent=1 // pred_check
      _
    $region3: #{tpu_custom_call.1} parent=1 // pred_check_branch
      %12 = sbr.rel (0) target = $region5
    $region4: #{tpu_custom_call.1} parent=1 // pred_region
      %s13 = sadd.s32 0, 0
      %p14 = scmp.lt.s32.totalorder %s13, 0
      %s15 = scalar_select %p14, %s13, 0
      %s17 = ssub.s32 64, 64
      %18 = vsyncadd [#allocation4], %s17
      %s19 = smul.addr %s15, 4
      %s20 = smul.addr %s19, 16
      %s21 = scalar_lea.hbm %s0, %s20
      %s23 = sshll.u32 [#allocation3], 4
      %s24 = int_to_ptr.vmem [resolvable:$true] %s23
      %26 = dma.hbm_to_vmem [thread:$0]  %s21, 64, %s24, [#allocation4]
    $region5: #{tpu_custom_call.1} parent=1 // pred_fallthru
      _
    // Predicated region
    $region6: #{tpu_custom_call.1} parent=1 // pred_check
      _
    $region7: #{tpu_custom_call.1} parent=1 // pred_check_branch
      %28 = sbr.rel (0) target = $region9
    $region8: #{tpu_custom_call.1} parent=1 // pred_region
      %s29 = sadd.s32 0, 0
      %p30 = scmp.lt.s32.totalorder %s29, 0
      %s31 = scalar_select %p30, %s29, 0
      %s33 = ssub.s32 64, 64
      %34 = vsyncadd [#allocation7], %s33
      %s35 = smul.addr %s31, 4
      %s36 = smul.addr %s35, 16
      %s37 = scalar_lea.hbm %s1, %s36
      %s39 = sshll.u32 [#allocation6], 4
      %s40 = int_to_ptr.vmem [resolvable:$true] %s39
      %42 = dma.hbm_to_vmem [thread:$0]  %s37, 64, %s40, [#allocation7]
    $region9: #{tpu_custom_call.1} parent=1 // pred_fallthru
      _
    // Predicated region
    $region10: #{tpu_custom_call.1} parent=1 // pred_check
      _
    $region11: #{tpu_custom_call.1} parent=1 // pred_check_branch
      %44 = sbr.rel (0) target = $region13
    $region12: #{tpu_custom_call.1} parent=1 // pred_region
      %s45 = sadd.s32 0, 0
      %p46 = scmp.lt.s32.totalorder %s45, 0
      %s47 = scalar_select %p46, %s45, 0
      %p48 = scmp.lt.s32.totalorder %s47, 0
      %s49 = scalar_select %p48, %s47, 0
      %s50 = smul.addr %s49, 4
      %s51 = scalar_lea.vmem %s2, %s50
      %s52 = sadd.s32 0, 0
      %p53 = scmp.lt.s32.totalorder %s52, 0
      %s54 = scalar_select %p53, %s52, 0
    $region13: #{tpu_custom_call.1} parent=1 // pred_fallthru
      _
    // Predicated region
    $region14: #{tpu_custom_call.1} parent=1 // pred_check
      _
    $region15: #{tpu_custom_call.1} parent=1 // pred_check_branch
      %56 = sbr.rel (0) target = $region17
    $region16: #{tpu_custom_call.1} parent=1 // pred_region
      %57 = dma.done [#allocation4], 64
    $region17: #{tpu_custom_call.1} parent=1 // pred_fallthru
      _
    // Predicated region
    $region18: #{tpu_custom_call.1} parent=1 // pred_check
      _
    $region19: #{tpu_custom_call.1} parent=1 // pred_check_branch
      %59 = sbr.rel (0) target = $region21
    $region20: #{tpu_custom_call.1} parent=1 // pred_region
      %60 = dma.done [#allocation7], 64
    $region21: #{tpu_custom_call.1} parent=1 // pred_fallthru
      _
    %s61 = sadd.s32 0, 0
    %p62 = scmp.lt.s32.totalorder %s61, 0
    %s63 = scalar_select %p62, %s61, 0
    %p64 = scmp.lt.s32.totalorder %s63, 0
    %s65 = scalar_select %p64, %s63, 0
    %s66 = smul.addr %s65, 4
    %s67 = scalar_lea.vmem %s2, %s66
    %s68 = sadd.s32 0, 0
    %p69 = scmp.lt.s32.totalorder %s68, 0
    %s70 = scalar_select %p69, %s68, 0
    %s71 = sadd.s32 0, 0
    %p72 = scmp.lt.s32.totalorder %s71, 0
    %s73 = scalar_select %p72, %s71, 0
    %s74 = sadd.s32 0, 0
    %p75 = scmp.lt.s32.totalorder %s74, 0
    %s76 = scalar_select %p75, %s74, 0
    %p77 = scmp.lt.s32.totalorder %s76, 0
    %s78 = scalar_select %p77, %s76, 0
    %s79 = smul.addr %s78, 4
    %s80 = scalar_lea.vmem %s2, %s79
    %s81 = sadd.s32 0, 0
    %p82 = scmp.lt.s32.totalorder %s81, 0
    %s83 = scalar_select %p82, %s81, 0
    %p84 = scmp.eq.s32.totalorder 0, 0
    // Predicated region
    $region22: #{tpu_custom_call.1} parent=1 // pred_check
      %p85 = pneg %p84
    $region23: #{tpu_custom_call.1} parent=1 // pred_check_branch
      %87 = sbr.rel (%p85) target = $region25
    $region24: #{tpu_custom_call.1} parent=1 // pred_region
      %s88 = smul.u32 0, 4
      %s89 = scalar_lea.vmem [#allocation2], %s88
      %v90 = vlaneseq
      %vm91 = vcmp.ge.s32.totalorder %v90, 0
      %vm92 = vcmp.lt.s32.totalorder %v90, 512
      %vm93 = vmand %vm91, %vm92
      %94 = vst.msk [vmem:[%s89] sm:$0xf] %vm93, 0.0
    $region25: #{tpu_custom_call.1} parent=1 // pred_fallthru
      _
    %v95 = vld [vmem:[#allocation3] sm:$0xf]
    %v96 = vunpack.c.l.bf16 %v95
    %v97 = vld [vmem:[#allocation6] sm:$0xf]
    %v98 = vunpack.c.l.bf16 %v97
    %v99 = vld [vmem:[%s80] sm:$0xf]
    %v100 = vunpack.c.l.bf16 %v99
    %v101 = vand.u32 2147483647, %v96
    %v102 = vsub.f32 0.0, %v101
    %v103 = vmul.f32 %v102, 1.442695
    %v104 = vpow.pop %v103
    %v105 = vadd.f32 %v104, 1.0
    %v106 = vlog2.pop %v105
    %v107 = vmul.f32 %v106, 0.6931472
    %v108 = vmin.f32 %v96, 0.0
    %v109 = vsub.f32 %v108, %v107
    %v110 = vsub.f32 0.0, %v96
    %v111 = vmin.f32 %v110, 0.0
    %v112 = vsub.f32 %v111, %v107
    %v113 = vmax.f32 %v109, -18.420681
    %v114 = vmax.f32 %v112, -18.420681
    %v115 = vmul.f32 %v112, 1.442695
    %v116 = vpow.pop %v115
    %v117 = vmul.f32 %v109, 1.442695
    %v118 = vpow.pop %v117
    %v119 = vsub.f32 0.0, %v100
    %v120 = vmul.f32 %v98, %v113
    %v121 = vmul.f32 %v116, %v120
    %v122 = vsub.f32 1.0, %v98
    %v123 = vmul.f32 %v122, %v114
    %v124 = vmul.f32 %v118, %v123
    %v125 = vadd.f32 %v121, %v124
    %v126 = vmul.f32 %v119, %v125
    %s127 = smul.u32 0, 4
    %s128 = scalar_lea.vmem [#allocation2], %s127
    %v129 = vld [vmem:[%s128] sm:$0xf]
    %v132 = vunpack.c.l.s4 1966171168
    %v133 = vunpack.c.0.s8 %v132
    %v134 = vlaneseq
    %v135 = vshrl.u32 %v134, 7
    %v136 = vsub.s32 %v133, %v135
    %v137 = vrot.slane %v126, %v136
    %v139 = vadd.f32 %v129, %v137
    %v140 = vlaneseq
    %vm141 = vcmp.ge.s32.totalorder %v140, 0
    %vm142 = vcmp.lt.s32.totalorder %v140, 512
    %vm143 = vmand %vm141, %vm142
    %144 = vst.msk [vmem:[%s128] sm:$0xf] %vm143, %v139
    // Predicated region
    $region26: #{tpu_custom_call.1} parent=1 // pred_check
      %p145 = pneg %p84
    $region27: #{tpu_custom_call.1} parent=1 // pred_check_branch
      %147 = sbr.rel (%p145) target = $region29
    $region28: #{tpu_custom_call.1} parent=1 // pred_region
      %v148 = vld [vmem:[%s128] sm:$0xf]
      %v150 = vlaneseq
      %v151 = vshrl.u32 %v150, 7
      %v152 = vsub.s32 0, %v151
      %v153 = vrot.slane %v148, %v152
      %v154 = vlaneseq
      %v155 = vshrl.u32 %v154, 7
      %v156 = vsub.s32 1, %v155
      %v157 = vrot.slane %v148, %v156
      %v158 = vlaneseq
      %v159 = vshrl.u32 %v158, 7
      %v160 = vsub.s32 2, %v159
      %v161 = vrot.slane %v148, %v160
      %v162 = vlaneseq
      %v163 = vshrl.u32 %v162, 7
      %v164 = vsub.s32 3, %v163
      %v165 = vrot.slane %v148, %v164
      %vm170 = vcmask 1040384
      %v171 = vsel %vm170, %v153, 0.0
      %v172 = vsel %vm170, %v157, 0.0
      %v173 = vadd.f32 %v171, %v172
      %v174 = vsel %vm170, %v161, 0.0
      %v175 = vadd.f32 %v173, %v174
      %v176 = vsel %vm170, %v165, 0.0
      %v177 = vadd.f32 %v175, %v176
      %178 = vadd.xlane.f32.xlu0 %v177
      %v179 = vpop.xlane.xlu0 %178
      %v180 = vrot.slane %v179, 4
      %v181 = vadd.f32 %v179, %v180
      %v182 = vrot.slane %v181, 2
      %v183 = vadd.f32 %v181, %v182
      %v184 = vrot.slane %v183, 1
      %v185 = vadd.f32 %v183, %v184
      %s186 = vtos %v185
      %v187 = vstv %s186
      %188 = vst [vmem:[#allocation8] sm:$0xff] %v187
    $region29: #{tpu_custom_call.1} parent=1 // pred_fallthru
      _
    // Predicated region
    $region30: #{tpu_custom_call.1} parent=1 // pred_check
      _
    $region31: #{tpu_custom_call.1} parent=1 // pred_check_branch
      %190 = sbr.rel (0) target = $region33
    $region32: #{tpu_custom_call.1} parent=1 // pred_region
      %s192 = ssub.s32 128, 128
      %193 = vsyncadd [#allocation5], %s192
      %s195 = sshll.u32 [#allocation8], 4
      %s196 = int_to_ptr.vmem [resolvable:$true] %s195
      %198 = dma.vmem_to_hbm [thread:$0]  %s196, 128, %s3, [#allocation5]
    $region33: #{tpu_custom_call.1} parent=1 // pred_fallthru
      _
    // Predicated region
    $region34: #{tpu_custom_call.1} parent=1 // pred_check
      _
    $region35: #{tpu_custom_call.1} parent=1 // pred_check_branch
      %200 = sbr.rel (0) target = $region37
    $region36: #{tpu_custom_call.1} parent=1 // pred_region
      %201 = dma.done [#allocation5], 128
    $region37: #{tpu_custom_call.1} parent=1 // pred_fallthru
      _
    %202 = vsyncpa [#allocation4], 1
    %203 = vsyncpa [#allocation7], 1
    %204 = vsyncpa [#allocation5], 1

</llo_original>
